<compile_context>
chip_gen: v5e
topology: v5e:2x2
jax: 0.10.0
libtpu: 0.0.40
codegen_flags: <defaults>
</compile_context>

<pallas_src>
import functools

import jax
import jax.numpy as jnp
from jax import lax
from jax.experimental import pallas as pl
from jax.experimental.pallas import tpu as pltpu

# Module hyper-parameters (PersistLoss.__init__), scaled to small demo sizes.
DIMS = [0, 1, 2]
KS = [16, 8, 4]          # original default was [100, 20, 10]
NUM_DIMS = len(DIMS)
K_MAX = max(KS)
N_BARS = 256             # padded number of bars per homology dimension
N_NEIGH = 4              # surrogate diagrams consume the 4 nearest neighbours

# kNN kernel tiling: queries per grid step (lanes) / db points per inner chunk
# (sublanes).  Both 128 so the diagonal (self) chunk index equals the grid index.
TM = 128
DB_CHUNK = 128

# Plain Python floats only — never captured jnp Arrays (that was the compile bug).
BIG = 3.0e37             # knockout sentinel: > any real / padded squared distance
PAD_VAL = 1.0e12         # padding coordinate; assumes real |coords| << 1e12


# ----------------------------------------------------------------------------
# Kernel 1: fused pairwise squared distances + running 4-NN
#   query index on lanes, db index on sublanes, db cloud VMEM-resident
# ----------------------------------------------------------------------------
def knn4_kernel(q_ref, db_ref, nn_ref, *, n_chunks):
    """q_ref : (c, TM)        query tile, channel on sublanes, query on lanes
       db_ref: (n_pad, c)     whole point cloud, resident in VMEM for all steps
       nn_ref: (N_NEIGH, TM)  4 smallest squared distances per query lane, asc."""
    i = pl.program_id(0)
    q = q_ref[...].astype(jnp.float32)           # (c, TM)
    c = q.shape[0]

    def chunk_top4(ci, mask_self):
        # ci: chunk index (traced int32).  mask_self: static Python bool.
        start = pl.multiple_of(ci * DB_CHUNK, DB_CHUNK)
        db = db_ref[pl.ds(start, DB_CHUNK), :].astype(jnp.float32)   # (DB_CHUNK, c)

        # Squared distances on the VPU: sum_ch (db - q)^2, shape (DB_CHUNK, TM).
        d2 = None
        for ch in range(c):                                           # c == 3
            diff = db[:, ch:ch + 1] - q[ch:ch + 1, :]                 # (DB,1)-(1,TM)
            sq = diff * diff
            d2 = sq if d2 is None else d2 + sq

        if mask_self:
            # Only the diagonal chunk pays for the self-exclusion iotas.
            sub = lax.broadcasted_iota(jnp.int32, (DB_CHUNK, TM), 0)
            ln = lax.broadcasted_iota(jnp.int32, (DB_CHUNK, TM), 1)
            d2 = jnp.where(sub == ln, BIG, d2)

        # 4 smallest per query lane (ascending).  Each extraction is one sublane
        # min-reduce; exact ties are knocked out together (tiny semantics change
        # only for exactly duplicated distances — irrelevant for the surrogate).
        mins = []
        cur = d2
        for _ in range(N_NEIGH):
            m = jnp.min(cur, axis=0, keepdims=True)                   # (1, TM)
            mins.append(m)
            cur = jnp.where(cur == m, BIG, cur)
        return mins

    # Diagonal chunk first: self-exclusion + accumulator init in one shot.
    regs_init = chunk_top4(i, mask_self=True)                         # 4 x (1, TM)

    def body(j, regs):
        regs = list(regs)
        cj = j + (j >= i).astype(jnp.int32)        # skip the diagonal chunk
        mins = chunk_top4(cj, mask_self=False)
        # Insert sorted candidates into the sorted running top-4.  Candidate k
        # can only land at position >= k (earlier candidates are <= it).
        for k_idx, t in enumerate(mins):
            carry = t
            for s in range(k_idx, N_NEIGH):
                lo = jnp.minimum(regs[s], carry)
                hi = jnp.maximum(regs[s], carry)
                regs[s] = lo
                carry = hi
        return tuple(regs)

    if n_chunks > 1:
        regs = lax.fori_loop(0, n_chunks - 1, body, tuple(regs_init),
                             unroll=(n_chunks - 1) <= 8)
    else:
        regs = tuple(regs_init)

    for s in range(N_NEIGH):
        nn_ref[s:s + 1, :] = regs[s]


def knn4_sqdist(points):
    """4 nearest-neighbour *squared* distances per point, shape (N_NEIGH, n), ascending."""
    n, c = points.shape
    assert TM == DB_CHUNK
    n_pad = ((n + TM - 1) // TM) * TM

    pts = points.astype(jnp.float32)
    if n_pad > n:
        # Far-away padding points (coordinate PAD_VAL): never among the 4-NN of
        # real points as long as real coordinates are << PAD_VAL; padded query
        # lanes produce garbage that is sliced off below.
        pad = jnp.full((n_pad - n, c), PAD_VAL, jnp.float32)
        pts = jnp.concatenate([pts, pad], axis=0)
    pts_t = pts.T                                        # (c, n_pad)

    n_chunks = n_pad // DB_CHUNK
    kernel = functools.partial(knn4_kernel, n_chunks=n_chunks)

    knn = pl.pallas_call(
        kernel,
        out_shape=jax.ShapeDtypeStruct((N_NEIGH, n_pad), jnp.float32),
        grid_spec=pltpu.PrefetchScalarGridSpec(
            num_scalar_prefetch=0,
            grid=(n_pad // TM,),
            in_specs=[
                # query tile: channel on sublanes, query index on lanes
                pl.BlockSpec((c, TM), lambda i: (0, i)),
                # whole cloud, constant block index -> fetched into VMEM once
                pl.BlockSpec((n_pad, c), lambda i: (0, 0)),
            ],
            out_specs=pl.BlockSpec((N_NEIGH, TM), lambda i: (0, i)),
        ),
        compiler_params=pltpu.CompilerParams(
            dimension_semantics=("parallel",),
            vmem_limit_bytes=48 * 1024 * 1024),   # v7x-safe headroom for large n
    )(pts_t, pts)
    return knn[:, :n]


# ----------------------------------------------------------------------------
# Kernel 2: TopKBarcodeLengths + MSE loss, summed over homology dimensions
#   (launch-bound; kept simple per review)
# ----------------------------------------------------------------------------
def _finite(x):
    # not-NaN and not +/- inf (Python-float inf -> jaxpr literal)
    return (x == x) & (jnp.abs(x) != jnp.inf)


def persist_feature_loss_kernel(b1_ref, d1_ref, b2_ref, d2_ref, loss_ref):
    # births / deaths refs: (NUM_DIMS, N_BARS) f32, resident in VMEM.
    NEG = -1.0   # knockout floor; barcode lengths are >= 0 after zeroing

    # get_barcode_lengths: length = death - birth; infinite / NaN bars -> 0.
    l1 = d1_ref[...] - b1_ref[...]
    l2 = d2_ref[...] - b2_ref[...]
    l1 = jnp.where(_finite(l1), l1, 0.0)
    l2 = jnp.where(_finite(l2), l2, 0.0)

    lane = lax.broadcasted_iota(jnp.int32, (NUM_DIMS, N_BARS), 1)

    # Iterative descending-top-K walk for all homology dims at once; first
    # occurrence of each max is knocked out (matches torch sort/topk on ties).
    sq_per_iter = []                      # K_MAX entries, each (NUM_DIMS, 1)
    l1c, l2c = l1, l2
    for _ in range(K_MAX):
        m1 = jnp.max(l1c, axis=1, keepdims=True)
        m2 = jnp.max(l2c, axis=1, keepdims=True)
        diff = m1 - m2
        sq_per_iter.append(diff * diff)
        idx1 = jnp.min(jnp.where(l1c == m1, lane, N_BARS), axis=1, keepdims=True)
        idx2 = jnp.min(jnp.where(l2c == m2, lane, N_BARS), axis=1, keepdims=True)
        l1c = jnp.where(lane == idx1, NEG, l1c)
        l2c = jnp.where(lane == idx2, NEG, l2c)

    # torch.nn.MSELoss per dim (mean over that dim's k top lengths), summed.
    total = None
    for d_idx in range(NUM_DIMS):
        k = KS[d_idx]
        s = sq_per_iter[0][d_idx:d_idx + 1, :]
        for it in range(1, k):
            s = s + sq_per_iter[it][d_idx:d_idx + 1, :]
        contrib = s / float(k)
        total = contrib if total is None else total + contrib
    loss_ref[...] = total


def topk_mse_loss(b1, d1, b2, d2):
    return pl.pallas_call(
        persist_feature_loss_kernel,
        out_shape=jax.ShapeDtypeStruct((1, 1), jnp.float32),
    )(b1, d1, b2, d2)


# ----------------------------------------------------------------------------
# Surrogate for AlphaLayer (plain-JAX glue on top of the fused Pallas kernel)
# ----------------------------------------------------------------------------
def surrogate_alpha_diagrams(points):
    # TODO(synk): replace with a true alpha-complex persistence once available.
    n = points.shape[0]
    d_nn = jnp.sqrt(knn4_sqdist(points))                 # (N_NEIGH, n), ascending

    births = jnp.zeros((NUM_DIMS, N_BARS), jnp.float32)
    deaths = jnp.zeros((NUM_DIMS, N_BARS), jnp.float32)

    # dim 0: born at 0, die at nearest-neighbour distance; one essential (inf) bar
    m0 = min(n, N_BARS)
    d0_death = d_nn[0, :m0].at[0].set(jnp.inf)
    deaths = deaths.at[0, :m0].set(d0_death)

    # dim 1: subset of points, birth = 1st NN dist, death = 3rd NN dist
    n1 = min(n // 2, N_BARS)
    births = births.at[1, :n1].set(d_nn[0, :n1])
    deaths = deaths.at[1, :n1].set(d_nn[2, :n1])

    # dim 2: smaller subset, birth = 2nd NN dist, death = 4th NN dist
    n2 = min(n // 4, N_BARS)
    births = births.at[2, :n2].set(d_nn[1, :n2])
    deaths = deaths.at[2, :n2].set(d_nn[3, :n2])

    return births, deaths


# ----------------------------------------------------------------------------
# PersistLoss.forward
# ----------------------------------------------------------------------------
def persist_loss(x1, x2, diag_gt=None):
    # x1, x2 are (c, h, w) CHW; permuted to (h*w, c) point clouds as in torch
    # (x.permute(1, 2, 0).view(-1, c)).
    c, h, w = x1.shape
    p1 = jnp.transpose(x1, (1, 2, 0)).reshape(h * w, c)
    diag1 = surrogate_alpha_diagrams(p1)
    if diag_gt is None:
        p2 = jnp.transpose(x2, (1, 2, 0)).reshape(h * w, c)
        diag2 = surrogate_alpha_diagrams(p2)
    else:
        diag2 = diag_gt

    b1, d1 = diag1
    b2, d2 = diag2
    loss = topk_mse_loss(b1, d1, b2, d2)[0, 0]
    return loss, diag2


# ----------------------------------------------------------------------------
# Plain-JAX references (correctness checks only)
# ----------------------------------------------------------------------------
def knn4_sqdist_ref(points):
    n = points.shape[0]
    pts = points.astype(jnp.float32)
    d2 = jnp.sum((pts[:, None, :] - pts[None, :, :]) ** 2, axis=-1)
    d2 = jnp.where(jnp.eye(n, dtype=bool), jnp.inf, d2)
    return jnp.sort(d2, axis=1)[:, :N_NEIGH].T           # (N_NEIGH, n)


def topk_mse_loss_ref(b1, d1, b2, d2):
    def feats(b, dth, dim, k):
        ln = dth[dim] - b[dim]
        ln = jnp.where(jnp.isfinite(ln), ln, 0.0)
        return jnp.sort(ln)[::-1][:k]
    total = 0.0
    for idx, dim in enumerate(DIMS):
        f1 = feats(b1, d1, dim, KS[idx])
        f2 = feats(b2, d2, dim, KS[idx])
        total = total + jnp.mean((f1 - f2) ** 2)
    return total


if __name__ == "__main__":
    key = jax.random.PRNGKey(0)
    k1, k2 = jax.random.split(key)
    c, h, w = 3, 16, 16                   # 256 points in R^3 (maxdim=2 sensible)
    x1 = jax.random.normal(k1, (c, h, w), dtype=jnp.float32)
    x2 = jax.random.normal(k2, (c, h, w), dtype=jnp.float32)

    loss, diag2 = persist_loss(x1, x2)
    loss = jax.block_until_ready(loss)
    jax.block_until_ready(diag2)
    assert bool(jnp.isfinite(loss)), "loss is not finite"

    # Correctness: Pallas 4-NN vs plain-JAX reference.
    p1 = jnp.transpose(x1, (1, 2, 0)).reshape(h * w, c)
    knn_pal = jax.block_until_ready(knn4_sqdist(p1))
    knn_ref = knn4_sqdist_ref(p1)
    assert bool(jnp.allclose(knn_pal, knn_ref, rtol=1e-4, atol=1e-5)), "kNN mismatch"

    # Correctness: Pallas TopK/MSE loss vs plain-JAX reference on same diagrams.
    b1, d1 = surrogate_alpha_diagrams(p1)
    b2, d2 = diag2
    loss_ref = topk_mse_loss_ref(b1, d1, b2, d2)
    assert bool(jnp.allclose(loss, loss_ref, rtol=1e-4, atol=1e-6)), "loss mismatch"

    print("KERNEL_OK")
</pallas_src>

<mosaic_0001>
module attributes {stable_mosaic.version = 11 : i64} {
  func.func @knn4_kernel(%arg0: i32, %arg1: memref<3x128xf32, #tpu.memory_space<vmem>>, %arg2: memref<256x3xf32, #tpu.memory_space<vmem>>, %arg3: memref<4x128xf32, #tpu.memory_space<vmem>>) attributes {dimension_semantics = [#tpu.dimension_semantics<parallel>], iteration_bounds = array<i64: 2>, scalar_prefetch = 0 : i64, scratch_operands = 0 : i64, tpu.core_type = #tpu.core_type<tc>, window_params = [{transform_indices = @transform_0, window_bounds = array<i64: 3, 128>}, {pipeline_mode = #tpu.pipeline_mode<synchronous>, transform_indices = @transform_1, window_bounds = array<i64: 256, 3>}, {transform_indices = @transform_2, window_bounds = array<i64: 4, 128>}]} {
    %c0 = arith.constant 0 : index
    %c0_0 = arith.constant 0 : index
    %0 = vector.load %arg1[%c0, %c0_0] : memref<3x128xf32, #tpu.memory_space<vmem>>, vector<3x128xf32>
    %c128_i32 = arith.constant 128 : i32
    %1 = arith.muli %arg0, %c128_i32 : i32
    %2 = tpu.assume_multiple %1, 128 : i32
    %3 = arith.index_cast %2 : i32 to index
    %c0_1 = arith.constant 0 : index
    %4 = vector.load %arg2[%3, %c0_1] : memref<256x3xf32, #tpu.memory_space<vmem>>, vector<128x3xf32>
    %5 = vector.extract_strided_slice %4 {offsets = [0, 0], sizes = [128, 1], strides = [1, 1]} : vector<128x3xf32> to vector<128x1xf32>
    %6 = vector.extract_strided_slice %0 {offsets = [0, 0], sizes = [1, 128], strides = [1, 1]} : vector<3x128xf32> to vector<1x128xf32>
    %7 = vector.broadcast %5 : vector<128x1xf32> to vector<128x128xf32>
    %8 = vector.broadcast %6 : vector<1x128xf32> to vector<128x128xf32>
    %9 = arith.subf %7, %8 : vector<128x128xf32>
    %10 = arith.mulf %9, %9 : vector<128x128xf32>
    %11 = vector.extract_strided_slice %4 {offsets = [0, 1], sizes = [128, 1], strides = [1, 1]} : vector<128x3xf32> to vector<128x1xf32>
    %12 = vector.extract_strided_slice %0 {offsets = [1, 0], sizes = [1, 128], strides = [1, 1]} : vector<3x128xf32> to vector<1x128xf32>
    %13 = vector.broadcast %11 : vector<128x1xf32> to vector<128x128xf32>
    %14 = vector.broadcast %12 : vector<1x128xf32> to vector<128x128xf32>
    %15 = arith.subf %13, %14 : vector<128x128xf32>
    %16 = arith.mulf %15, %15 : vector<128x128xf32>
    %17 = arith.addf %10, %16 : vector<128x128xf32>
    %18 = vector.extract_strided_slice %4 {offsets = [0, 2], sizes = [128, 1], strides = [1, 1]} : vector<128x3xf32> to vector<128x1xf32>
    %19 = vector.extract_strided_slice %0 {offsets = [2, 0], sizes = [1, 128], strides = [1, 1]} : vector<3x128xf32> to vector<1x128xf32>
    %20 = vector.broadcast %18 : vector<128x1xf32> to vector<128x128xf32>
    %21 = vector.broadcast %19 : vector<1x128xf32> to vector<128x128xf32>
    %22 = arith.subf %20, %21 : vector<128x128xf32>
    %23 = arith.mulf %22, %22 : vector<128x128xf32>
    %24 = arith.addf %17, %23 : vector<128x128xf32>
    %25 = tpu.iota {dimensions = array<i32: 0>} : vector<128x128xi32>
    %26 = tpu.iota {dimensions = array<i32: 1>} : vector<128x128xi32>
    %27 = arith.cmpi eq, %25, %26 : vector<128x128xi32>
    %cst = arith.constant 3.000000e+37 : f32
    %28 = vector.broadcast %cst : f32 to vector<128x128xf32>
    %29 = arith.select %27, %28, %24 : vector<128x128xi1>, vector<128x128xf32>
    %cst_2 = arith.constant dense<0x7F800000> : vector<128xf32>
    %30 = vector.multi_reduction <minimumf>, %29, %cst_2 [0] : vector<128x128xf32> to vector<128xf32>
    %31 = vector.shape_cast %30 : vector<128xf32> to vector<1x128xf32>
    %32 = vector.broadcast %31 : vector<1x128xf32> to vector<128x128xf32>
    %33 = arith.cmpf oeq, %29, %32 : vector<128x128xf32>
    %cst_3 = arith.constant 3.000000e+37 : f32
    %34 = vector.broadcast %cst_3 : f32 to vector<128x128xf32>
    %35 = arith.select %33, %34, %29 : vector<128x128xi1>, vector<128x128xf32>
    %cst_4 = arith.constant dense<0x7F800000> : vector<128xf32>
    %36 = vector.multi_reduction <minimumf>, %35, %cst_4 [0] : vector<128x128xf32> to vector<128xf32>
    %37 = vector.shape_cast %36 : vector<128xf32> to vector<1x128xf32>
    %38 = vector.broadcast %37 : vector<1x128xf32> to vector<128x128xf32>
    %39 = arith.cmpf oeq, %35, %38 : vector<128x128xf32>
    %cst_5 = arith.constant 3.000000e+37 : f32
    %40 = vector.broadcast %cst_5 : f32 to vector<128x128xf32>
    %41 = arith.select %39, %40, %35 : vector<128x128xi1>, vector<128x128xf32>
    %cst_6 = arith.constant dense<0x7F800000> : vector<128xf32>
    %42 = vector.multi_reduction <minimumf>, %41, %cst_6 [0] : vector<128x128xf32> to vector<128xf32>
    %43 = vector.shape_cast %42 : vector<128xf32> to vector<1x128xf32>
    %44 = vector.broadcast %43 : vector<1x128xf32> to vector<128x128xf32>
    %45 = arith.cmpf oeq, %41, %44 : vector<128x128xf32>
    %cst_7 = arith.constant 3.000000e+37 : f32
    %46 = vector.broadcast %cst_7 : f32 to vector<128x128xf32>
    %47 = arith.select %45, %46, %41 : vector<128x128xi1>, vector<128x128xf32>
    %cst_8 = arith.constant dense<0x7F800000> : vector<128xf32>
    %48 = vector.multi_reduction <minimumf>, %47, %cst_8 [0] : vector<128x128xf32> to vector<128xf32>
    %49 = vector.shape_cast %48 : vector<128xf32> to vector<1x128xf32>
    %c0_i32 = arith.constant 0 : i32
    %50 = arith.cmpi sge, %c0_i32, %arg0 : i32
    %51 = arith.extui %50 : i1 to i32
    %52 = arith.addi %c0_i32, %51 : i32
    %c128_i32_9 = arith.constant 128 : i32
    %53 = arith.muli %52, %c128_i32_9 : i32
    %54 = tpu.assume_multiple %53, 128 : i32
    %55 = arith.index_cast %54 : i32 to index
    %c0_10 = arith.constant 0 : index
    %56 = vector.load %arg2[%55, %c0_10] : memref<256x3xf32, #tpu.memory_space<vmem>>, vector<128x3xf32>
    %57 = vector.extract_strided_slice %56 {offsets = [0, 0], sizes = [128, 1], strides = [1, 1]} : vector<128x3xf32> to vector<128x1xf32>
    %58 = vector.extract_strided_slice %0 {offsets = [0, 0], sizes = [1, 128], strides = [1, 1]} : vector<3x128xf32> to vector<1x128xf32>
    %59 = vector.broadcast %57 : vector<128x1xf32> to vector<128x128xf32>
    %60 = vector.broadcast %58 : vector<1x128xf32> to vector<128x128xf32>
    %61 = arith.subf %59, %60 : vector<128x128xf32>
    %62 = arith.mulf %61, %61 : vector<128x128xf32>
    %63 = vector.extract_strided_slice %56 {offsets = [0, 1], sizes = [128, 1], strides = [1, 1]} : vector<128x3xf32> to vector<128x1xf32>
    %64 = vector.extract_strided_slice %0 {offsets = [1, 0], sizes = [1, 128], strides = [1, 1]} : vector<3x128xf32> to vector<1x128xf32>
    %65 = vector.broadcast %63 : vector<128x1xf32> to vector<128x128xf32>
    %66 = vector.broadcast %64 : vector<1x128xf32> to vector<128x128xf32>
    %67 = arith.subf %65, %66 : vector<128x128xf32>
    %68 = arith.mulf %67, %67 : vector<128x128xf32>
    %69 = arith.addf %62, %68 : vector<128x128xf32>
    %70 = vector.extract_strided_slice %56 {offsets = [0, 2], sizes = [128, 1], strides = [1, 1]} : vector<128x3xf32> to vector<128x1xf32>
    %71 = vector.extract_strided_slice %0 {offsets = [2, 0], sizes = [1, 128], strides = [1, 1]} : vector<3x128xf32> to vector<1x128xf32>
    %72 = vector.broadcast %70 : vector<128x1xf32> to vector<128x128xf32>
    %73 = vector.broadcast %71 : vector<1x128xf32> to vector<128x128xf32>
    %74 = arith.subf %72, %73 : vector<128x128xf32>
    %75 = arith.mulf %74, %74 : vector<128x128xf32>
    %76 = arith.addf %69, %75 : vector<128x128xf32>
    %cst_11 = arith.constant dense<0x7F800000> : vector<128xf32>
    %77 = vector.multi_reduction <minimumf>, %76, %cst_11 [0] : vector<128x128xf32> to vector<128xf32>
    %78 = vector.shape_cast %77 : vector<128xf32> to vector<1x128xf32>
    %79 = vector.broadcast %78 : vector<1x128xf32> to vector<128x128xf32>
    %80 = arith.cmpf oeq, %76, %79 : vector<128x128xf32>
    %cst_12 = arith.constant 3.000000e+37 : f32
    %81 = vector.broadcast %cst_12 : f32 to vector<128x128xf32>
    %82 = arith.select %80, %81, %76 : vector<128x128xi1>, vector<128x128xf32>
    %cst_13 = arith.constant dense<0x7F800000> : vector<128xf32>
    %83 = vector.multi_reduction <minimumf>, %82, %cst_13 [0] : vector<128x128xf32> to vector<128xf32>
    %84 = vector.shape_cast %83 : vector<128xf32> to vector<1x128xf32>
    %85 = vector.broadcast %84 : vector<1x128xf32> to vector<128x128xf32>
    %86 = arith.cmpf oeq, %82, %85 : vector<128x128xf32>
    %cst_14 = arith.constant 3.000000e+37 : f32
    %87 = vector.broadcast %cst_14 : f32 to vector<128x128xf32>
    %88 = arith.select %86, %87, %82 : vector<128x128xi1>, vector<128x128xf32>
    %cst_15 = arith.constant dense<0x7F800000> : vector<128xf32>
    %89 = vector.multi_reduction <minimumf>, %88, %cst_15 [0] : vector<128x128xf32> to vector<128xf32>
    %90 = vector.shape_cast %89 : vector<128xf32> to vector<1x128xf32>
    %91 = vector.broadcast %90 : vector<1x128xf32> to vector<128x128xf32>
    %92 = arith.cmpf oeq, %88, %91 : vector<128x128xf32>
    %cst_16 = arith.constant 3.000000e+37 : f32
    %93 = vector.broadcast %cst_16 : f32 to vector<128x128xf32>
    %94 = arith.select %92, %93, %88 : vector<128x128xi1>, vector<128x128xf32>
    %cst_17 = arith.constant dense<0x7F800000> : vector<128xf32>
    %95 = vector.multi_reduction <minimumf>, %94, %cst_17 [0] : vector<128x128xf32> to vector<128xf32>
    %96 = vector.shape_cast %95 : vector<128xf32> to vector<1x128xf32>
    %97 = arith.minimumf %31, %78 : vector<1x128xf32>
    %98 = arith.maximumf %31, %78 : vector<1x128xf32>
    %99 = arith.minimumf %37, %98 : vector<1x128xf32>
    %100 = arith.maximumf %37, %98 : vector<1x128xf32>
    %101 = arith.minimumf %43, %100 : vector<1x128xf32>
    %102 = arith.maximumf %43, %100 : vector<1x128xf32>
    %103 = arith.minimumf %49, %102 : vector<1x128xf32>
    %104 = arith.minimumf %99, %84 : vector<1x128xf32>
    %105 = arith.maximumf %99, %84 : vector<1x128xf32>
    %106 = arith.minimumf %101, %105 : vector<1x128xf32>
    %107 = arith.maximumf %101, %105 : vector<1x128xf32>
    %108 = arith.minimumf %103, %107 : vector<1x128xf32>
    %109 = arith.minimumf %106, %90 : vector<1x128xf32>
    %110 = arith.maximumf %106, %90 : vector<1x128xf32>
    %111 = arith.minimumf %108, %110 : vector<1x128xf32>
    %112 = arith.minimumf %111, %96 : vector<1x128xf32>
    %c1_i32 = arith.constant 1 : i32
    %c0_18 = arith.constant 0 : index
    %c0_19 = arith.constant 0 : index
    %113 = vector.load %arg3[%c0_18, %c0_19] : memref<4x128xf32, #tpu.memory_space<vmem>>, vector<1x128xf32>
    tpu.vector_store %arg3[%c0_18, %c0_19], %97 {strides = array<i32>} : memref<4x128xf32, #tpu.memory_space<vmem>>, vector<1x128xf32>,
    %c1 = arith.constant 1 : index
    %c0_20 = arith.constant 0 : index
    %114 = vector.load %arg3[%c1, %c0_20] : memref<4x128xf32, #tpu.memory_space<vmem>>, vector<1x128xf32>
    tpu.vector_store %arg3[%c1, %c0_20], %104 {strides = array<i32>} : memref<4x128xf32, #tpu.memory_space<vmem>>, vector<1x128xf32>,
    %c2 = arith.constant 2 : index
    %c0_21 = arith.constant 0 : index
    %115 = vector.load %arg3[%c2, %c0_21] : memref<4x128xf32, #tpu.memory_space<vmem>>, vector<1x128xf32>
    tpu.vector_store %arg3[%c2, %c0_21], %109 {strides = array<i32>} : memref<4x128xf32, #tpu.memory_space<vmem>>, vector<1x128xf32>,
    %c3 = arith.constant 3 : index
    %c0_22 = arith.constant 0 : index
    %116 = vector.load %arg3[%c3, %c0_22] : memref<4x128xf32, #tpu.memory_space<vmem>>, vector<1x128xf32>
    tpu.vector_store %arg3[%c3, %c0_22], %112 {strides = array<i32>} : memref<4x128xf32, #tpu.memory_space<vmem>>, vector<1x128xf32>,
    return
  }
  func.func @transform_0(%arg0: i32) -> (i32, i32) {
    %c0_i32 = arith.constant 0 : i32
    %c0_i32_0 = arith.constant 0 : i32
    return %c0_i32, %arg0 : i32, i32
  }
  func.func @transform_1(%arg0: i32) -> (i32, i32) {
    %c0_i32 = arith.constant 0 : i32
    %c0_i32_0 = arith.constant 0 : i32
    %c0_i32_1 = arith.constant 0 : i32
    return %c0_i32, %c0_i32_0 : i32, i32
  }
  func.func @transform_2(%arg0: i32) -> (i32, i32) {
    %c0_i32 = arith.constant 0 : i32
    %c0_i32_0 = arith.constant 0 : i32
    return %c0_i32, %arg0 : i32, i32
  }
}

</mosaic_0001>

<llo_original>
// kernel: tpu_custom_call.1
$region0: #{tpu_custom_call.1}
  #allocation0 [shape = 'u32[]', space=smem, size = 0x4, offset = 0x4, fixed_abs, tag = 'smem constant byte address 0x4 - core index']
  #allocation1 [shape = 'u32[72,128]{1,0:T(1,128)}', space=vmem, size = 0x9000, scoped, tag = 'internal scratch']
  %s0 = inlined_call_operand.vmem [shape: f32[3,256], index: 0, kind: input, shape index: {}]
  %s1 = inlined_call_operand.vmem [shape: f32[256,3], index: 1, kind: input, shape index: {}]
  %s2 = inlined_call_operand.hbm [shape: f32[4,256], index: 2, kind: output, shape index: {}]
  %s3 = sld [smem:[#allocation0]]
  $region41: #{tpu_custom_call.1} parent=0
    _
  %s5 = ssub.s32 1, %s3
  %s6 = scalar_select 0, %s5, %s3
  $region1: #{tpu_custom_call.1} parent=0
    #allocation2 [shape = 'u8[4096]{0}', space=vmem, size = 0x1000, scoped, tag = 'output window, operand 0']
    #allocation3 [shape = 's32[2]{0}', space=sflag, size = 0x8, scoped, tag = 'scoped memory for tpu_custom_call.1']
    %7 = vsyncpa [#allocation3], 0
    %s8 = scalar_lea.sflag [#allocation3], 1
    %9 = vsyncpa %s8, 0
    loop: start=0, step=1, limit=4
    $region2: #{tpu_custom_call.1} parent=1 // loop_pre_header
      _
    $region3: #{tpu_custom_call.1} parent=1 // loop_header
      %s11 = sphi 0, %s15
      %p12 = scmp.ge.s32.totalorder %s11, 4
      %s21 = sphi 0, %s23
      %s24 = sphi 0, %s21
      %s25 = sphi 0, %s24
      %s41 = sphi 0, %s25
      %s45 = sphi 0, %s45
      %s47 = sphi 0, %s45
      %s48 = sphi 0, %s47
      %s62 = sphi 0, %s48
      %s68 = sphi 0, %s70
      %s71 = sphi 0, %s68
      %s72 = sphi 0, %s71
      %s88 = sphi 0, %s72
    $region4: #{tpu_custom_call.1} parent=1 // loop_header_branch
      %14 = sbr.rel (%p12) target = $region8
    $region5: #{tpu_custom_call.1} parent=1 // loop_body
      %s16 = ssub.s32 %s11, 1
      %s17 = ssub.s32 %s11, 2
      %s18 = sadd.s32 %s11, 1
      %s19 = ssub.s32 %s11, %s18
      %p20 = scmp.eq.s32.totalorder %s19, 0
      %s22 = sadd.s32 %s21, 1
      %s23 = scalar_select %p20, %s21, %s22
      %p26 = pneg %p20
      %p27 = scmp.eq.s32.totalorder %s11, 1
      %p28 = por %p26, %p27
      %p29 = scmp.ne.s32.totalorder %s21, %s24
      %p30 = scmp.eq.s32.totalorder %s11, 0
      %p31 = por %p29, %p30
      %p32 = scmp.ne.s32.totalorder %s21, %s24
      %p33 = scmp.eq.s32.totalorder %s16, 1
      %p34 = por %p32, %p33
      %p35 = scmp.ne.s32.totalorder %s24, %s25
      %p36 = scmp.eq.s32.totalorder %s16, 0
      %p37 = por %p35, %p36
      %p38 = scmp.ne.s32.totalorder %s24, %s25
      %p39 = scmp.eq.s32.totalorder %s17, 1
      %p40 = por %p38, %p39
      %p42 = scmp.ne.s32.totalorder %s25, %s41
      %p43 = scmp.eq.s32.totalorder %s17, 0
      %p44 = por %p42, %p43
      %s46 = sadd.s32 %s45, 1
      %p49 = scmp.eq.s32.totalorder %s11, 1
      %p50 = scmp.ne.s32.totalorder %s45, %s47
      %p51 = scmp.eq.s32.totalorder %s11, 0
      %p52 = por %p50, %p51
      %p53 = scmp.ne.s32.totalorder %s45, %s47
      %p54 = scmp.eq.s32.totalorder %s16, 1
      %p55 = por %p53, %p54
      %p56 = scmp.ne.s32.totalorder %s47, %s48
      %p57 = scmp.eq.s32.totalorder %s16, 0
      %p58 = por %p56, %p57
      %p59 = scmp.ne.s32.totalorder %s47, %s48
      %p60 = scmp.eq.s32.totalorder %s17, 1
      %p61 = por %p59, %p60
      %p63 = scmp.ne.s32.totalorder %s48, %s62
      %p64 = scmp.eq.s32.totalorder %s17, 0
      %p65 = por %p63, %p64
      %s66 = ssub.s32 %s11, %s18
      %p67 = scmp.eq.s32.totalorder %s66, 0
      %s69 = sadd.s32 %s68, 1
      %s70 = scalar_select %p67, %s68, %s69
      %p73 = pneg %p67
      %p74 = scmp.eq.s32.totalorder %s11, 1
      %p75 = por %p73, %p74
      %p76 = scmp.ne.s32.totalorder %s68, %s71
      %p77 = scmp.eq.s32.totalorder %s11, 0
      %p78 = por %p76, %p77
      %p79 = scmp.ne.s32.totalorder %s68, %s71
      %p80 = scmp.eq.s32.totalorder %s16, 1
      %p81 = por %p79, %p80
      %p82 = scmp.ne.s32.totalorder %s71, %s72
      %p83 = scmp.eq.s32.totalorder %s16, 0
      %p84 = por %p82, %p83
      %p85 = scmp.ne.s32.totalorder %s71, %s72
      %p86 = scmp.eq.s32.totalorder %s17, 1
      %p87 = por %p85, %p86
      %p89 = scmp.ne.s32.totalorder %s72, %s88
      %p90 = scmp.eq.s32.totalorder %s17, 0
      %p91 = por %p89, %p90
      %p92 = scmp.le.s32.totalorder 1, %s11
      %p93 = scmp.lt.s32.totalorder %s11, 3
      %p94 = pnand %p92, %p93
      %p95 = pneg %p94
      // Predicated region
      $region9: #{tpu_custom_call.1} parent=5 // pred_check
        _
      $region10: #{tpu_custom_call.1} parent=5 // pred_check_branch
        %97 = sbr.rel (%p94) target = $region12
      $region11: #{tpu_custom_call.1} parent=5 // pred_region
        %s98 = ssub.s32 %s11, 1
        // Predicated region
        $region13: #{tpu_custom_call.1} parent=11 // pred_check
          %p99 = pneg %p58
        $region14: #{tpu_custom_call.1} parent=11 // pred_check_branch
          %101 = sbr.rel (%p99) target = $region16
        $region15: #{tpu_custom_call.1} parent=11 // pred_region
          _
        $region16: #{tpu_custom_call.1} parent=11 // pred_fallthru
          _
      $region12: #{tpu_custom_call.1} parent=5 // pred_fallthru
        _
      %p102 = scmp.lt.s32.totalorder %s11, 2
      // Predicated region
      $region17: #{tpu_custom_call.1} parent=5 // pred_check
        %p103 = pneg %p102
      $region18: #{tpu_custom_call.1} parent=5 // pred_check_branch
        %105 = sbr.rel (%p103) target = $region20
      $region19: #{tpu_custom_call.1} parent=5 // pred_region
        // Predicated region
        $region21: #{tpu_custom_call.1} parent=19 // pred_check
          %p106 = pneg %p31
        $region22: #{tpu_custom_call.1} parent=19 // pred_check_branch
          %108 = sbr.rel (%p106) target = $region24
        $region23: #{tpu_custom_call.1} parent=19 // pred_region
          %p109 = scmp.lt.s32.totalorder %s11, 1
          %s110 = scalar_select %p109, %s11, 1
          %s111 = smul.addr %s110, 4
          %s112 = scalar_lea.vmem %s0, %s111
        $region24: #{tpu_custom_call.1} parent=19 // pred_fallthru
          _
      $region20: #{tpu_custom_call.1} parent=5 // pred_fallthru
        _
      %p113 = scmp.le.s32.totalorder 1, %s11
      %p114 = scmp.lt.s32.totalorder %s11, 3
      %p115 = pnand %p113, %p114
      %p116 = pneg %p115
      // Predicated region
      $region25: #{tpu_custom_call.1} parent=5 // pred_check
        _
      $region26: #{tpu_custom_call.1} parent=5 // pred_check_branch
        %118 = sbr.rel (%p115) target = $region28
      $region27: #{tpu_custom_call.1} parent=5 // pred_region
        %s119 = ssub.s32 %s11, 1
        %p120 = scmp.lt.s32.totalorder %s16, 1
        %s121 = scalar_select %p120, %s16, 1
        %s122 = smul.addr %s121, 4
        %s123 = scalar_lea.vmem %s0, %s122
        %p124 = pneg %p37
        %p125 = pneg %p34
        %p126 = pneg %p58
        %p127 = pneg %p55
        %p128 = pneg %p84
        %p129 = pneg %p81
        %s130 = sand.u32 %s71, 1
        %s131 = scalar_lea.sflag [#allocation3], %s130
        %s132 = sand.u32 %s71, 1
        %s133 = smul.addr %s132, 4
        %s134 = scalar_lea.vmem [#allocation2], %s133
        %p135 = scmp.lt.s32.totalorder %s16, 1
        %s136 = scalar_select %p135, %s16, 1
        %s137 = smul.addr %s136, 4
        %s138 = scalar_lea.vmem %s0, %s137
        %v139 = vld [vmem:[%s138] sm:$0x7]
        %s140 = smul.u32 %s16, 128
        %s141 = scalar_lea.vmem %s1, %s140
        %v142 = vld [vmem:[%s141] sm:$0xff]
        %v143 = vld [vmem:[%s141 + $0x8] sm:$0xff]
        %v144 = vld [vmem:[%s141 + $0x10] sm:$0xff]
        %v145 = vld [vmem:[%s141 + $0x18] sm:$0xff]
        %v146 = vld [vmem:[%s141 + $0x20] sm:$0xff]
        %v147 = vld [vmem:[%s141 + $0x28] sm:$0xff]
        %v148 = vld [vmem:[%s141 + $0x30] sm:$0xff]
        %v149 = vld [vmem:[%s141 + $0x38] sm:$0xff]
        %v150 = vld [vmem:[%s141 + $0x40] sm:$0xff]
        %v151 = vld [vmem:[%s141 + $0x48] sm:$0xff]
        %v152 = vld [vmem:[%s141 + $0x50] sm:$0xff]
        %v153 = vld [vmem:[%s141 + $0x58] sm:$0xff]
        %v154 = vld [vmem:[%s141 + $0x60] sm:$0xff]
        %v155 = vld [vmem:[%s141 + $0x68] sm:$0xff]
        %v156 = vld [vmem:[%s141 + $0x70] sm:$0xff]
        %v157 = vld [vmem:[%s141 + $0x78] sm:$0xff]
        %159 = vset.pattern.permute.xlu0 0
        %160 = vperm.xlu0 %159, %v142
        %v161 = vpop.permute.xlu0 %160
        %164 = vset.pattern.permute.xlu0 0
        %165 = vperm.xlu0 %164, %v143
        %v166 = vpop.permute.xlu0 %165
        %169 = vset.pattern.permute.xlu0 0
        %170 = vperm.xlu0 %169, %v144
        %v171 = vpop.permute.xlu0 %170
        %174 = vset.pattern.permute.xlu0 0
        %175 = vperm.xlu0 %174, %v145
        %v176 = vpop.permute.xlu0 %175
        %179 = vset.pattern.permute.xlu0 0
        %180 = vperm.xlu0 %179, %v146
        %v181 = vpop.permute.xlu0 %180
        %184 = vset.pattern.permute.xlu0 0
        %185 = vperm.xlu0 %184, %v147
        %v186 = vpop.permute.xlu0 %185
        %189 = vset.pattern.permute.xlu0 0
        %190 = vperm.xlu0 %189, %v148
        %v191 = vpop.permute.xlu0 %190
        %194 = vset.pattern.permute.xlu0 0
        %195 = vperm.xlu0 %194, %v149
        %v196 = vpop.permute.xlu0 %195
        %199 = vset.pattern.permute.xlu0 0
        %200 = vperm.xlu0 %199, %v150
        %v201 = vpop.permute.xlu0 %200
        %204 = vset.pattern.permute.xlu0 0
        %205 = vperm.xlu0 %204, %v151
        %v206 = vpop.permute.xlu0 %205
        %209 = vset.pattern.permute.xlu0 0
        %210 = vperm.xlu0 %209, %v152
        %v211 = vpop.permute.xlu0 %210
        %214 = vset.pattern.permute.xlu0 0
        %215 = vperm.xlu0 %214, %v153
        %v216 = vpop.permute.xlu0 %215
        %219 = vset.pattern.permute.xlu0 0
        %220 = vperm.xlu0 %219, %v154
        %v221 = vpop.permute.xlu0 %220
        %224 = vset.pattern.permute.xlu0 0
        %225 = vperm.xlu0 %224, %v155
        %v226 = vpop.permute.xlu0 %225
        %229 = vset.pattern.permute.xlu0 0
        %230 = vperm.xlu0 %229, %v156
        %v231 = vpop.permute.xlu0 %230
        %234 = vset.pattern.permute.xlu0 0
        %235 = vperm.xlu0 %234, %v157
        %v236 = vpop.permute.xlu0 %235
        %v238 = vperm.slane %v139, 0
        %v239 = vsub.f32 %v161, %v238
        %v240 = vsub.f32 %v166, %v238
        %v241 = vsub.f32 %v171, %v238
        %v242 = vsub.f32 %v176, %v238
        %v243 = vsub.f32 %v181, %v238
        %v244 = vsub.f32 %v186, %v238
        %v245 = vsub.f32 %v191, %v238
        %v246 = vsub.f32 %v196, %v238
        %v247 = vsub.f32 %v201, %v238
        %v248 = vsub.f32 %v206, %v238
        %v249 = vsub.f32 %v211, %v238
        %v250 = vsub.f32 %v216, %v238
        %v251 = vsub.f32 %v221, %v238
        %v252 = vsub.f32 %v226, %v238
        %v253 = vsub.f32 %v231, %v238
        %v254 = vsub.f32 %v236, %v238
        %v255 = vmul.f32 %v239, %v239
        %v256 = vmul.f32 %v240, %v240
        %v257 = vmul.f32 %v241, %v241
        %v258 = vmul.f32 %v242, %v242
        %v259 = vmul.f32 %v243, %v243
        %v260 = vmul.f32 %v244, %v244
        %v261 = vmul.f32 %v245, %v245
        %v262 = vmul.f32 %v246, %v246
        %v263 = vmul.f32 %v247, %v247
        %v264 = vmul.f32 %v248, %v248
        %v265 = vmul.f32 %v249, %v249
        %v266 = vmul.f32 %v250, %v250
        %v267 = vmul.f32 %v251, %v251
        %v268 = vmul.f32 %v252, %v252
        %v269 = vmul.f32 %v253, %v253
        %v270 = vmul.f32 %v254, %v254
        %271 = vset.pattern.permute.xlu0 1
        %272 = vperm.xlu0 %271, %v142
        %v273 = vpop.permute.xlu0 %272
        %275 = vset.pattern.permute.xlu0 1
        %276 = vperm.xlu0 %275, %v143
        %v277 = vpop.permute.xlu0 %276
        %279 = vset.pattern.permute.xlu0 1
        %280 = vperm.xlu0 %279, %v144
        %v281 = vpop.permute.xlu0 %280
        %283 = vset.pattern.permute.xlu0 1
        %284 = vperm.xlu0 %283, %v145
        %v285 = vpop.permute.xlu0 %284
        %287 = vset.pattern.permute.xlu0 1
        %288 = vperm.xlu0 %287, %v146
        %v289 = vpop.permute.xlu0 %288
        %291 = vset.pattern.permute.xlu0 1
        %292 = vperm.xlu0 %291, %v147
        %v293 = vpop.permute.xlu0 %292
        %295 = vset.pattern.permute.xlu0 1
        %296 = vperm.xlu0 %295, %v148
        %v297 = vpop.permute.xlu0 %296
        %299 = vset.pattern.permute.xlu0 1
        %300 = vperm.xlu0 %299, %v149
        %v301 = vpop.permute.xlu0 %300
        %303 = vset.pattern.permute.xlu0 1
        %304 = vperm.xlu0 %303, %v150
        %v305 = vpop.permute.xlu0 %304
        %307 = vset.pattern.permute.xlu0 1
        %308 = vperm.xlu0 %307, %v151
        %v309 = vpop.permute.xlu0 %308
        %311 = vset.pattern.permute.xlu0 1
        %312 = vperm.xlu0 %311, %v152
        %v313 = vpop.permute.xlu0 %312
        %315 = vset.pattern.permute.xlu0 1
        %316 = vperm.xlu0 %315, %v153
        %v317 = vpop.permute.xlu0 %316
        %319 = vset.pattern.permute.xlu0 1
        %320 = vperm.xlu0 %319, %v154
        %v321 = vpop.permute.xlu0 %320
        %323 = vset.pattern.permute.xlu0 1
        %324 = vperm.xlu0 %323, %v155
        %v325 = vpop.permute.xlu0 %324
        %327 = vset.pattern.permute.xlu0 1
        %328 = vperm.xlu0 %327, %v156
        %v329 = vpop.permute.xlu0 %328
        %331 = vset.pattern.permute.xlu0 1
        %332 = vperm.xlu0 %331, %v157
        %v333 = vpop.permute.xlu0 %332
        %v335 = vperm.slane %v139, 1
        %v336 = vsub.f32 %v273, %v335
        %v337 = vsub.f32 %v277, %v335
        %v338 = vsub.f32 %v281, %v335
        %v339 = vsub.f32 %v285, %v335
        %v340 = vsub.f32 %v289, %v335
        %v341 = vsub.f32 %v293, %v335
        %v342 = vsub.f32 %v297, %v335
        %v343 = vsub.f32 %v301, %v335
        %v344 = vsub.f32 %v305, %v335
        %v345 = vsub.f32 %v309, %v335
        %v346 = vsub.f32 %v313, %v335
        %v347 = vsub.f32 %v317, %v335
        %v348 = vsub.f32 %v321, %v335
        %v349 = vsub.f32 %v325, %v335
        %v350 = vsub.f32 %v329, %v335
        %v351 = vsub.f32 %v333, %v335
        %v352 = vmul.f32 %v336, %v336
        %v353 = vmul.f32 %v337, %v337
        %v354 = vmul.f32 %v338, %v338
        %v355 = vmul.f32 %v339, %v339
        %v356 = vmul.f32 %v340, %v340
        %v357 = vmul.f32 %v341, %v341
        %v358 = vmul.f32 %v342, %v342
        %v359 = vmul.f32 %v343, %v343
        %v360 = vmul.f32 %v344, %v344
        %v361 = vmul.f32 %v345, %v345
        %v362 = vmul.f32 %v346, %v346
        %v363 = vmul.f32 %v347, %v347
        %v364 = vmul.f32 %v348, %v348
        %v365 = vmul.f32 %v349, %v349
        %v366 = vmul.f32 %v350, %v350
        %v367 = vmul.f32 %v351, %v351
        %v368 = vadd.f32 %v255, %v352
        %v369 = vadd.f32 %v256, %v353
        %v370 = vadd.f32 %v257, %v354
        %v371 = vadd.f32 %v258, %v355
        %v372 = vadd.f32 %v259, %v356
        %v373 = vadd.f32 %v260, %v357
        %v374 = vadd.f32 %v261, %v358
        %v375 = vadd.f32 %v262, %v359
        %v376 = vadd.f32 %v263, %v360
        %v377 = vadd.f32 %v264, %v361
        %v378 = vadd.f32 %v265, %v362
        %v379 = vadd.f32 %v266, %v363
        %v380 = vadd.f32 %v267, %v364
        %v381 = vadd.f32 %v268, %v365
        %v382 = vadd.f32 %v269, %v366
        %v383 = vadd.f32 %v270, %v367
        %384 = vset.pattern.permute.xlu0 2
        %385 = vperm.xlu0 %384, %v142
        %v386 = vpop.permute.xlu0 %385
        %388 = vset.pattern.permute.xlu0 2
        %389 = vperm.xlu0 %388, %v143
        %v390 = vpop.permute.xlu0 %389
        %392 = vset.pattern.permute.xlu0 2
        %393 = vperm.xlu0 %392, %v144
        %v394 = vpop.permute.xlu0 %393
        %396 = vset.pattern.permute.xlu0 2
        %397 = vperm.xlu0 %396, %v145
        %v398 = vpop.permute.xlu0 %397
        %400 = vset.pattern.permute.xlu0 2
        %401 = vperm.xlu0 %400, %v146
        %v402 = vpop.permute.xlu0 %401
        %404 = vset.pattern.permute.xlu0 2
        %405 = vperm.xlu0 %404, %v147
        %v406 = vpop.permute.xlu0 %405
        %408 = vset.pattern.permute.xlu0 2
        %409 = vperm.xlu0 %408, %v148
        %v410 = vpop.permute.xlu0 %409
        %412 = vset.pattern.permute.xlu0 2
        %413 = vperm.xlu0 %412, %v149
        %v414 = vpop.permute.xlu0 %413
        %416 = vset.pattern.permute.xlu0 2
        %417 = vperm.xlu0 %416, %v150
        %v418 = vpop.permute.xlu0 %417
        %420 = vset.pattern.permute.xlu0 2
        %421 = vperm.xlu0 %420, %v151
        %v422 = vpop.permute.xlu0 %421
        %424 = vset.pattern.permute.xlu0 2
        %425 = vperm.xlu0 %424, %v152
        %v426 = vpop.permute.xlu0 %425
        %428 = vset.pattern.permute.xlu0 2
        %429 = vperm.xlu0 %428, %v153
        %v430 = vpop.permute.xlu0 %429
        %432 = vset.pattern.permute.xlu0 2
        %433 = vperm.xlu0 %432, %v154
        %v434 = vpop.permute.xlu0 %433
        %436 = vset.pattern.permute.xlu0 2
        %437 = vperm.xlu0 %436, %v155
        %v438 = vpop.permute.xlu0 %437
        %440 = vset.pattern.permute.xlu0 2
        %441 = vperm.xlu0 %440, %v156
        %v442 = vpop.permute.xlu0 %441
        %444 = vset.pattern.permute.xlu0 2
        %445 = vperm.xlu0 %444, %v157
        %v446 = vpop.permute.xlu0 %445
        %v448 = vperm.slane %v139, 2
        %v449 = vsub.f32 %v386, %v448
        %v450 = vsub.f32 %v390, %v448
        %v451 = vsub.f32 %v394, %v448
        %v452 = vsub.f32 %v398, %v448
        %v453 = vsub.f32 %v402, %v448
        %v454 = vsub.f32 %v406, %v448
        %v455 = vsub.f32 %v410, %v448
        %v456 = vsub.f32 %v414, %v448
        %v457 = vsub.f32 %v418, %v448
        %v458 = vsub.f32 %v422, %v448
        %v459 = vsub.f32 %v426, %v448
        %v460 = vsub.f32 %v430, %v448
        %v461 = vsub.f32 %v434, %v448
        %v462 = vsub.f32 %v438, %v448
        %v463 = vsub.f32 %v442, %v448
        %v464 = vsub.f32 %v446, %v448
        %v465 = vmul.f32 %v449, %v449
        %v466 = vmul.f32 %v450, %v450
        %v467 = vmul.f32 %v451, %v451
        %v468 = vmul.f32 %v452, %v452
        %v469 = vmul.f32 %v453, %v453
        %v470 = vmul.f32 %v454, %v454
        %v471 = vmul.f32 %v455, %v455
        %v472 = vmul.f32 %v456, %v456
        %v473 = vmul.f32 %v457, %v457
        %v474 = vmul.f32 %v458, %v458
        %v475 = vmul.f32 %v459, %v459
        %v476 = vmul.f32 %v460, %v460
        %v477 = vmul.f32 %v461, %v461
        %v478 = vmul.f32 %v462, %v462
        %v479 = vmul.f32 %v463, %v463
        %v480 = vmul.f32 %v464, %v464
        %v481 = vadd.f32 %v368, %v465
        %v482 = vadd.f32 %v369, %v466
        %v483 = vadd.f32 %v370, %v467
        %v484 = vadd.f32 %v371, %v468
        %v485 = vadd.f32 %v372, %v469
        %v486 = vadd.f32 %v373, %v470
        %v487 = vadd.f32 %v374, %v471
        %v488 = vadd.f32 %v375, %v472
        %v489 = vadd.f32 %v376, %v473
        %v490 = vadd.f32 %v377, %v474
        %v491 = vadd.f32 %v378, %v475
        %v492 = vadd.f32 %v379, %v476
        %v493 = vadd.f32 %v380, %v477
        %v494 = vadd.f32 %v381, %v478
        %v495 = vadd.f32 %v382, %v479
        %v496 = vadd.f32 %v383, %v480
        %v497 = vlaneseq
        %v498 = vshrl.u32 %v497, 7
        %v499 = vadd.s32 %v498, 8
        %v500 = vadd.s32 %v498, 16
        %v501 = vadd.s32 %v498, 24
        %v502 = vadd.s32 %v498, 32
        %v503 = vadd.s32 %v498, 40
        %v504 = vadd.s32 %v498, 48
        %v505 = vadd.s32 %v498, 56
        %v506 = vadd.s32 %v498, 64
        %v507 = vadd.s32 %v498, 72
        %v508 = vadd.s32 %v498, 80
        %v509 = vadd.s32 %v498, 88
        %v510 = vadd.s32 %v498, 96
        %v511 = vadd.s32 %v498, 104
        %v512 = vadd.s32 %v498, 112
        %v513 = vadd.s32 %v498, 120
        %v514 = vlaneseq
        %v515 = vand.u32 %v514, 127
        %vm516 = vcmp.eq.s32.totalorder %v498, %v515
        %vm517 = vcmp.eq.s32.totalorder %v499, %v515
        %vm518 = vcmp.eq.s32.totalorder %v500, %v515
        %vm519 = vcmp.eq.s32.totalorder %v501, %v515
        %vm520 = vcmp.eq.s32.totalorder %v502, %v515
        %vm521 = vcmp.eq.s32.totalorder %v503, %v515
        %vm522 = vcmp.eq.s32.totalorder %v504, %v515
        %vm523 = vcmp.eq.s32.totalorder %v505, %v515
        %vm524 = vcmp.eq.s32.totalorder %v506, %v515
        %vm525 = vcmp.eq.s32.totalorder %v507, %v515
        %vm526 = vcmp.eq.s32.totalorder %v508, %v515
        %vm527 = vcmp.eq.s32.totalorder %v509, %v515
        %vm528 = vcmp.eq.s32.totalorder %v510, %v515
        %vm529 = vcmp.eq.s32.totalorder %v511, %v515
        %vm530 = vcmp.eq.s32.totalorder %v512, %v515
        %vm531 = vcmp.eq.s32.totalorder %v513, %v515
        %v532 = vsel %vm516, 3e+37, %v481
        %v533 = vsel %vm517, 3e+37, %v482
        %v534 = vsel %vm518, 3e+37, %v483
        %v535 = vsel %vm519, 3e+37, %v484
        %v536 = vsel %vm520, 3e+37, %v485
        %v537 = vsel %vm521, 3e+37, %v486
        %v538 = vsel %vm522, 3e+37, %v487
        %v539 = vsel %vm523, 3e+37, %v488
        %v540 = vsel %vm524, 3e+37, %v489
        %v541 = vsel %vm525, 3e+37, %v490
        %v542 = vsel %vm526, 3e+37, %v491
        %v543 = vsel %vm527, 3e+37, %v492
        %v544 = vsel %vm528, 3e+37, %v493
        %v545 = vsel %vm529, 3e+37, %v494
        %v546 = vsel %vm530, 3e+37, %v495
        %v547 = vsel %vm531, 3e+37, %v496
        %v548 = vmin.f32 %v532, %v536
        %v549 = vmin.f32 %v533, %v537
        %v550 = vmin.f32 %v534, %v538
        %v551 = vmin.f32 %v535, %v539
        %v552 = vmin.f32 %v548, %v540
        %v553 = vmin.f32 %v549, %v541
        %v554 = vmin.f32 %v550, %v542
        %v555 = vmin.f32 %v551, %v543
        %v556 = vmin.f32 %v552, %v544
        %v557 = vmin.f32 %v553, %v545
        %v558 = vmin.f32 %v554, %v546
        %v559 = vmin.f32 %v555, %v547
        %v560 = vmin.f32 %v556, %v557
        %v561 = vmin.f32 %v558, %v559
        %v562 = vmin.f32 %v560, %v561
        %v563 = vrot.slane %v562, 4
        %v564 = vmin.f32 %v562, %v563
        %v565 = vrot.slane %v564, 2
        %v566 = vmin.f32 %v564, %v565
        %v567 = vrot.slane %v566, 1
        %v568 = vmin.f32 %v566, %v567
        %vm569 = vcmp.eq.f32.partialorder %v532, %v568
        %vm570 = vcmp.eq.f32.partialorder %v533, %v568
        %vm571 = vcmp.eq.f32.partialorder %v534, %v568
        %vm572 = vcmp.eq.f32.partialorder %v535, %v568
        %vm573 = vcmp.eq.f32.partialorder %v536, %v568
        %vm574 = vcmp.eq.f32.partialorder %v537, %v568
        %vm575 = vcmp.eq.f32.partialorder %v538, %v568
        %vm576 = vcmp.eq.f32.partialorder %v539, %v568
        %vm577 = vcmp.eq.f32.partialorder %v540, %v568
        %vm578 = vcmp.eq.f32.partialorder %v541, %v568
        %vm579 = vcmp.eq.f32.partialorder %v542, %v568
        %vm580 = vcmp.eq.f32.partialorder %v543, %v568
        %vm581 = vcmp.eq.f32.partialorder %v544, %v568
        %vm582 = vcmp.eq.f32.partialorder %v545, %v568
        %vm583 = vcmp.eq.f32.partialorder %v546, %v568
        %vm584 = vcmp.eq.f32.partialorder %v547, %v568
        %v585 = vsel %vm569, 3e+37, %v532
        %v586 = vsel %vm570, 3e+37, %v533
        %v587 = vsel %vm571, 3e+37, %v534
        %v588 = vsel %vm572, 3e+37, %v535
        %v589 = vsel %vm573, 3e+37, %v536
        %v590 = vsel %vm574, 3e+37, %v537
        %v591 = vsel %vm575, 3e+37, %v538
        %v592 = vsel %vm576, 3e+37, %v539
        %v593 = vsel %vm577, 3e+37, %v540
        %v594 = vsel %vm578, 3e+37, %v541
        %v595 = vsel %vm579, 3e+37, %v542
        %v596 = vsel %vm580, 3e+37, %v543
        %v597 = vsel %vm581, 3e+37, %v544
        %v598 = vsel %vm582, 3e+37, %v545
        %v599 = vsel %vm583, 3e+37, %v546
        %v600 = vsel %vm584, 3e+37, %v547
        %v601 = vmin.f32 %v585, %v589
        %v602 = vmin.f32 %v586, %v590
        %v603 = vmin.f32 %v587, %v591
        %v604 = vmin.f32 %v588, %v592
        %v605 = vmin.f32 %v601, %v593
        %v606 = vmin.f32 %v602, %v594
        %v607 = vmin.f32 %v603, %v595
        %v608 = vmin.f32 %v604, %v596
        %v609 = vmin.f32 %v605, %v597
        %v610 = vmin.f32 %v606, %v598
        %v611 = vmin.f32 %v607, %v599
        %v612 = vmin.f32 %v608, %v600
        %v613 = vmin.f32 %v609, %v610
        %v614 = vmin.f32 %v611, %v612
        %v615 = vmin.f32 %v613, %v614
        %v616 = vrot.slane %v615, 4
        %v617 = vmin.f32 %v615, %v616
        %v618 = vrot.slane %v617, 2
        %v619 = vmin.f32 %v617, %v618
        %v620 = vrot.slane %v619, 1
        %v621 = vmin.f32 %v619, %v620
        %vm622 = vcmp.eq.f32.partialorder %v585, %v621
        %vm623 = vcmp.eq.f32.partialorder %v586, %v621
        %vm624 = vcmp.eq.f32.partialorder %v587, %v621
        %vm625 = vcmp.eq.f32.partialorder %v588, %v621
        %vm626 = vcmp.eq.f32.partialorder %v589, %v621
        %vm627 = vcmp.eq.f32.partialorder %v590, %v621
        %vm628 = vcmp.eq.f32.partialorder %v591, %v621
        %vm629 = vcmp.eq.f32.partialorder %v592, %v621
        %vm630 = vcmp.eq.f32.partialorder %v593, %v621
        %vm631 = vcmp.eq.f32.partialorder %v594, %v621
        %vm632 = vcmp.eq.f32.partialorder %v595, %v621
        %vm633 = vcmp.eq.f32.partialorder %v596, %v621
        %vm634 = vcmp.eq.f32.partialorder %v597, %v621
        %vm635 = vcmp.eq.f32.partialorder %v598, %v621
        %vm636 = vcmp.eq.f32.partialorder %v599, %v621
        %vm637 = vcmp.eq.f32.partialorder %v600, %v621
        %v638 = vsel %vm622, 3e+37, %v585
        %v639 = vsel %vm623, 3e+37, %v586
        %v640 = vsel %vm624, 3e+37, %v587
        %v641 = vsel %vm625, 3e+37, %v588
        %v642 = vsel %vm626, 3e+37, %v589
        %v643 = vsel %vm627, 3e+37, %v590
        %v644 = vsel %vm628, 3e+37, %v591
        %v645 = vsel %vm629, 3e+37, %v592
        %v646 = vsel %vm630, 3e+37, %v593
        %v647 = vsel %vm631, 3e+37, %v594
        %v648 = vsel %vm632, 3e+37, %v595
        %v649 = vsel %vm633, 3e+37, %v596
        %v650 = vsel %vm634, 3e+37, %v597
        %v651 = vsel %vm635, 3e+37, %v598
        %v652 = vsel %vm636, 3e+37, %v599
        %v653 = vsel %vm637, 3e+37, %v600
        %v654 = vmin.f32 %v638, %v642
        %v655 = vmin.f32 %v639, %v643
        %v656 = vmin.f32 %v640, %v644
        %v657 = vmin.f32 %v641, %v645
        %v658 = vmin.f32 %v654, %v646
        %v659 = vmin.f32 %v655, %v647
        %v660 = vmin.f32 %v656, %v648
        %v661 = vmin.f32 %v657, %v649
        %v662 = vmin.f32 %v658, %v650
        %v663 = vmin.f32 %v659, %v651
        %v664 = vmin.f32 %v660, %v652
        %v665 = vmin.f32 %v661, %v653
        %v666 = vmin.f32 %v662, %v663
        %v667 = vmin.f32 %v664, %v665
        %v668 = vmin.f32 %v666, %v667
        %v669 = vrot.slane %v668, 4
        %v670 = vmin.f32 %v668, %v669
        %v671 = vrot.slane %v670, 2
        %v672 = vmin.f32 %v670, %v671
        %v673 = vrot.slane %v672, 1
        %v674 = vmin.f32 %v672, %v673
        %vm675 = vcmp.eq.f32.partialorder %v638, %v674
        %vm676 = vcmp.eq.f32.partialorder %v639, %v674
        %vm677 = vcmp.eq.f32.partialorder %v640, %v674
        %vm678 = vcmp.eq.f32.partialorder %v641, %v674
        %vm679 = vcmp.eq.f32.partialorder %v642, %v674
        %vm680 = vcmp.eq.f32.partialorder %v643, %v674
        %vm681 = vcmp.eq.f32.partialorder %v644, %v674
        %vm682 = vcmp.eq.f32.partialorder %v645, %v674
        %vm683 = vcmp.eq.f32.partialorder %v646, %v674
        %vm684 = vcmp.eq.f32.partialorder %v647, %v674
        %vm685 = vcmp.eq.f32.partialorder %v648, %v674
        %vm686 = vcmp.eq.f32.partialorder %v649, %v674
        %vm687 = vcmp.eq.f32.partialorder %v650, %v674
        %vm688 = vcmp.eq.f32.partialorder %v651, %v674
        %vm689 = vcmp.eq.f32.partialorder %v652, %v674
        %vm690 = vcmp.eq.f32.partialorder %v653, %v674
        %v691 = vsel %vm675, 3e+37, %v638
        %v692 = vsel %vm676, 3e+37, %v639
        %v693 = vsel %vm677, 3e+37, %v640
        %v694 = vsel %vm678, 3e+37, %v641
        %v695 = vsel %vm679, 3e+37, %v642
        %v696 = vsel %vm680, 3e+37, %v643
        %v697 = vsel %vm681, 3e+37, %v644
        %v698 = vsel %vm682, 3e+37, %v645
        %v699 = vsel %vm683, 3e+37, %v646
        %v700 = vsel %vm684, 3e+37, %v647
        %v701 = vsel %vm685, 3e+37, %v648
        %v702 = vsel %vm686, 3e+37, %v649
        %v703 = vsel %vm687, 3e+37, %v650
        %v704 = vsel %vm688, 3e+37, %v651
        %v705 = vsel %vm689, 3e+37, %v652
        %v706 = vsel %vm690, 3e+37, %v653
        %v707 = vmin.f32 %v691, %v695
        %v708 = vmin.f32 %v692, %v696
        %v709 = vmin.f32 %v693, %v697
        %v710 = vmin.f32 %v694, %v698
        %v711 = vmin.f32 %v707, %v699
        %v712 = vmin.f32 %v708, %v700
        %v713 = vmin.f32 %v709, %v701
        %v714 = vmin.f32 %v710, %v702
        %v715 = vmin.f32 %v711, %v703
        %v716 = vmin.f32 %v712, %v704
        %v717 = vmin.f32 %v713, %v705
        %v718 = vmin.f32 %v714, %v706
        %v719 = vmin.f32 %v715, %v716
        %v720 = vmin.f32 %v717, %v718
        %v721 = vmin.f32 %v719, %v720
        %v722 = vrot.slane %v721, 4
        %v723 = vmin.f32 %v721, %v722
        %v724 = vrot.slane %v723, 2
        %v725 = vmin.f32 %v723, %v724
        %v726 = vrot.slane %v725, 1
        %v727 = vmin.f32 %v725, %v726
        %p728 = scmp.le.s32.totalorder %s16, 0
        %s729 = scalar_select %p728, 1, 0
        %s730 = smul.u32 %s729, 128
        %s731 = scalar_lea.vmem %s1, %s730
        %v732 = vld [vmem:[%s731] sm:$0xff]
        %v733 = vld [vmem:[%s731 + $0x8] sm:$0xff]
        %v734 = vld [vmem:[%s731 + $0x10] sm:$0xff]
        %v735 = vld [vmem:[%s731 + $0x18] sm:$0xff]
        %v736 = vld [vmem:[%s731 + $0x20] sm:$0xff]
        %v737 = vld [vmem:[%s731 + $0x28] sm:$0xff]
        %v738 = vld [vmem:[%s731 + $0x30] sm:$0xff]
        %v739 = vld [vmem:[%s731 + $0x38] sm:$0xff]
        %v740 = vld [vmem:[%s731 + $0x40] sm:$0xff]
        %v741 = vld [vmem:[%s731 + $0x48] sm:$0xff]
        %v742 = vld [vmem:[%s731 + $0x50] sm:$0xff]
        %v743 = vld [vmem:[%s731 + $0x58] sm:$0xff]
        %v744 = vld [vmem:[%s731 + $0x60] sm:$0xff]
        %v745 = vld [vmem:[%s731 + $0x68] sm:$0xff]
        %v746 = vld [vmem:[%s731 + $0x70] sm:$0xff]
        %v747 = vld [vmem:[%s731 + $0x78] sm:$0xff]
        %749 = vset.pattern.permute.xlu0 0
        %750 = vperm.xlu0 %749, %v732
        %v751 = vpop.permute.xlu0 %750
        %754 = vset.pattern.permute.xlu0 0
        %755 = vperm.xlu0 %754, %v733
        %v756 = vpop.permute.xlu0 %755
        %759 = vset.pattern.permute.xlu0 0
        %760 = vperm.xlu0 %759, %v734
        %v761 = vpop.permute.xlu0 %760
        %764 = vset.pattern.permute.xlu0 0
        %765 = vperm.xlu0 %764, %v735
        %v766 = vpop.permute.xlu0 %765
        %769 = vset.pattern.permute.xlu0 0
        %770 = vperm.xlu0 %769, %v736
        %v771 = vpop.permute.xlu0 %770
        %774 = vset.pattern.permute.xlu0 0
        %775 = vperm.xlu0 %774, %v737
        %v776 = vpop.permute.xlu0 %775
        %779 = vset.pattern.permute.xlu0 0
        %780 = vperm.xlu0 %779, %v738
        %v781 = vpop.permute.xlu0 %780
        %784 = vset.pattern.permute.xlu0 0
        %785 = vperm.xlu0 %784, %v739
        %v786 = vpop.permute.xlu0 %785
        %789 = vset.pattern.permute.xlu0 0
        %790 = vperm.xlu0 %789, %v740
        %v791 = vpop.permute.xlu0 %790
        %794 = vset.pattern.permute.xlu0 0
        %795 = vperm.xlu0 %794, %v741
        %v796 = vpop.permute.xlu0 %795
        %799 = vset.pattern.permute.xlu0 0
        %800 = vperm.xlu0 %799, %v742
        %v801 = vpop.permute.xlu0 %800
        %804 = vset.pattern.permute.xlu0 0
        %805 = vperm.xlu0 %804, %v743
        %v806 = vpop.permute.xlu0 %805
        %809 = vset.pattern.permute.xlu0 0
        %810 = vperm.xlu0 %809, %v744
        %v811 = vpop.permute.xlu0 %810
        %814 = vset.pattern.permute.xlu0 0
        %815 = vperm.xlu0 %814, %v745
        %v816 = vpop.permute.xlu0 %815
        %819 = vset.pattern.permute.xlu0 0
        %820 = vperm.xlu0 %819, %v746
        %v821 = vpop.permute.xlu0 %820
        %824 = vset.pattern.permute.xlu0 0
        %825 = vperm.xlu0 %824, %v747
        %v826 = vpop.permute.xlu0 %825
        %v828 = vsub.f32 %v751, %v238
        %v829 = vsub.f32 %v756, %v238
        %v830 = vsub.f32 %v761, %v238
        %v831 = vsub.f32 %v766, %v238
        %v832 = vsub.f32 %v771, %v238
        %v833 = vsub.f32 %v776, %v238
        %v834 = vsub.f32 %v781, %v238
        %v835 = vsub.f32 %v786, %v238
        %v836 = vsub.f32 %v791, %v238
        %v837 = vsub.f32 %v796, %v238
        %v838 = vsub.f32 %v801, %v238
        %v839 = vsub.f32 %v806, %v238
        %v840 = vsub.f32 %v811, %v238
        %v841 = vsub.f32 %v816, %v238
        %v842 = vsub.f32 %v821, %v238
        %v843 = vsub.f32 %v826, %v238
        %v844 = vmul.f32 %v828, %v828
        %v845 = vmul.f32 %v829, %v829
        %v846 = vmul.f32 %v830, %v830
        %v847 = vmul.f32 %v831, %v831
        %v848 = vmul.f32 %v832, %v832
        %v849 = vmul.f32 %v833, %v833
        %v850 = vmul.f32 %v834, %v834
        %v851 = vmul.f32 %v835, %v835
        %v852 = vmul.f32 %v836, %v836
        %v853 = vmul.f32 %v837, %v837
        %v854 = vmul.f32 %v838, %v838
        %v855 = vmul.f32 %v839, %v839
        %v856 = vmul.f32 %v840, %v840
        %v857 = vmul.f32 %v841, %v841
        %v858 = vmul.f32 %v842, %v842
        %v859 = vmul.f32 %v843, %v843
        %860 = vset.pattern.permute.xlu0 1
        %861 = vperm.xlu0 %860, %v732
        %v862 = vpop.permute.xlu0 %861
        %864 = vset.pattern.permute.xlu0 1
        %865 = vperm.xlu0 %864, %v733
        %v866 = vpop.permute.xlu0 %865
        %868 = vset.pattern.permute.xlu0 1
        %869 = vperm.xlu0 %868, %v734
        %v870 = vpop.permute.xlu0 %869
        %872 = vset.pattern.permute.xlu0 1
        %873 = vperm.xlu0 %872, %v735
        %v874 = vpop.permute.xlu0 %873
        %876 = vset.pattern.permute.xlu0 1
        %877 = vperm.xlu0 %876, %v736
        %v878 = vpop.permute.xlu0 %877
        %880 = vset.pattern.permute.xlu0 1
        %881 = vperm.xlu0 %880, %v737
        %v882 = vpop.permute.xlu0 %881
        %884 = vset.pattern.permute.xlu0 1
        %885 = vperm.xlu0 %884, %v738
        %v886 = vpop.permute.xlu0 %885
        %888 = vset.pattern.permute.xlu0 1
        %889 = vperm.xlu0 %888, %v739
        %v890 = vpop.permute.xlu0 %889
        %892 = vset.pattern.permute.xlu0 1
        %893 = vperm.xlu0 %892, %v740
        %v894 = vpop.permute.xlu0 %893
        %896 = vset.pattern.permute.xlu0 1
        %897 = vperm.xlu0 %896, %v741
        %v898 = vpop.permute.xlu0 %897
        %900 = vset.pattern.permute.xlu0 1
        %901 = vperm.xlu0 %900, %v742
        %v902 = vpop.permute.xlu0 %901
        %904 = vset.pattern.permute.xlu0 1
        %905 = vperm.xlu0 %904, %v743
        %v906 = vpop.permute.xlu0 %905
        %908 = vset.pattern.permute.xlu0 1
        %909 = vperm.xlu0 %908, %v744
        %v910 = vpop.permute.xlu0 %909
        %912 = vset.pattern.permute.xlu0 1
        %913 = vperm.xlu0 %912, %v745
        %v914 = vpop.permute.xlu0 %913
        %916 = vset.pattern.permute.xlu0 1
        %917 = vperm.xlu0 %916, %v746
        %v918 = vpop.permute.xlu0 %917
        %920 = vset.pattern.permute.xlu0 1
        %921 = vperm.xlu0 %920, %v747
        %v922 = vpop.permute.xlu0 %921
        %v924 = vsub.f32 %v862, %v335
        %v925 = vsub.f32 %v866, %v335
        %v926 = vsub.f32 %v870, %v335
        %v927 = vsub.f32 %v874, %v335
        %v928 = vsub.f32 %v878, %v335
        %v929 = vsub.f32 %v882, %v335
        %v930 = vsub.f32 %v886, %v335
        %v931 = vsub.f32 %v890, %v335
        %v932 = vsub.f32 %v894, %v335
        %v933 = vsub.f32 %v898, %v335
        %v934 = vsub.f32 %v902, %v335
        %v935 = vsub.f32 %v906, %v335
        %v936 = vsub.f32 %v910, %v335
        %v937 = vsub.f32 %v914, %v335
        %v938 = vsub.f32 %v918, %v335
        %v939 = vsub.f32 %v922, %v335
        %v940 = vmul.f32 %v924, %v924
        %v941 = vmul.f32 %v925, %v925
        %v942 = vmul.f32 %v926, %v926
        %v943 = vmul.f32 %v927, %v927
        %v944 = vmul.f32 %v928, %v928
        %v945 = vmul.f32 %v929, %v929
        %v946 = vmul.f32 %v930, %v930
        %v947 = vmul.f32 %v931, %v931
        %v948 = vmul.f32 %v932, %v932
        %v949 = vmul.f32 %v933, %v933
        %v950 = vmul.f32 %v934, %v934
        %v951 = vmul.f32 %v935, %v935
        %v952 = vmul.f32 %v936, %v936
        %v953 = vmul.f32 %v937, %v937
        %v954 = vmul.f32 %v938, %v938
        %v955 = vmul.f32 %v939, %v939
        %v956 = vadd.f32 %v844, %v940
        %v957 = vadd.f32 %v845, %v941
        %v958 = vadd.f32 %v846, %v942
        %v959 = vadd.f32 %v847, %v943
        %v960 = vadd.f32 %v848, %v944
        %v961 = vadd.f32 %v849, %v945
        %v962 = vadd.f32 %v850, %v946
        %v963 = vadd.f32 %v851, %v947
        %v964 = vadd.f32 %v852, %v948
        %v965 = vadd.f32 %v853, %v949
        %v966 = vadd.f32 %v854, %v950
        %v967 = vadd.f32 %v855, %v951
        %v968 = vadd.f32 %v856, %v952
        %v969 = vadd.f32 %v857, %v953
        %v970 = vadd.f32 %v858, %v954
        %v971 = vadd.f32 %v859, %v955
        %972 = vset.pattern.permute.xlu0 2
        %973 = vperm.xlu0 %972, %v732
        %v974 = vpop.permute.xlu0 %973
        %976 = vset.pattern.permute.xlu0 2
        %977 = vperm.xlu0 %976, %v733
        %v978 = vpop.permute.xlu0 %977
        %980 = vset.pattern.permute.xlu0 2
        %981 = vperm.xlu0 %980, %v734
        %v982 = vpop.permute.xlu0 %981
        %984 = vset.pattern.permute.xlu0 2
        %985 = vperm.xlu0 %984, %v735
        %v986 = vpop.permute.xlu0 %985
        %988 = vset.pattern.permute.xlu0 2
        %989 = vperm.xlu0 %988, %v736
        %v990 = vpop.permute.xlu0 %989
        %992 = vset.pattern.permute.xlu0 2
        %993 = vperm.xlu0 %992, %v737
        %v994 = vpop.permute.xlu0 %993
        %996 = vset.pattern.permute.xlu0 2
        %997 = vperm.xlu0 %996, %v738
        %v998 = vpop.permute.xlu0 %997
        %1000 = vset.pattern.permute.xlu0 2
        %1001 = vperm.xlu0 %1000, %v739
        %v1002 = vpop.permute.xlu0 %1001
        %1004 = vset.pattern.permute.xlu0 2
        %1005 = vperm.xlu0 %1004, %v740
        %v1006 = vpop.permute.xlu0 %1005
        %1008 = vset.pattern.permute.xlu0 2
        %1009 = vperm.xlu0 %1008, %v741
        %v1010 = vpop.permute.xlu0 %1009
        %1012 = vset.pattern.permute.xlu0 2
        %1013 = vperm.xlu0 %1012, %v742
        %v1014 = vpop.permute.xlu0 %1013
        %1016 = vset.pattern.permute.xlu0 2
        %1017 = vperm.xlu0 %1016, %v743
        %v1018 = vpop.permute.xlu0 %1017
        %1020 = vset.pattern.permute.xlu0 2
        %1021 = vperm.xlu0 %1020, %v744
        %v1022 = vpop.permute.xlu0 %1021
        %1024 = vset.pattern.permute.xlu0 2
        %1025 = vperm.xlu0 %1024, %v745
        %v1026 = vpop.permute.xlu0 %1025
        %1028 = vset.pattern.permute.xlu0 2
        %1029 = vperm.xlu0 %1028, %v746
        %v1030 = vpop.permute.xlu0 %1029
        %1032 = vset.pattern.permute.xlu0 2
        %1033 = vperm.xlu0 %1032, %v747
        %v1034 = vpop.permute.xlu0 %1033
        %v1036 = vsub.f32 %v974, %v448
        %v1037 = vsub.f32 %v978, %v448
        %v1038 = vsub.f32 %v982, %v448
        %v1039 = vsub.f32 %v986, %v448
        %v1040 = vsub.f32 %v990, %v448
        %v1041 = vsub.f32 %v994, %v448
        %v1042 = vsub.f32 %v998, %v448
        %v1043 = vsub.f32 %v1002, %v448
        %v1044 = vsub.f32 %v1006, %v448
        %v1045 = vsub.f32 %v1010, %v448
        %v1046 = vsub.f32 %v1014, %v448
        %v1047 = vsub.f32 %v1018, %v448
        %v1048 = vsub.f32 %v1022, %v448
        %v1049 = vsub.f32 %v1026, %v448
        %v1050 = vsub.f32 %v1030, %v448
        %v1051 = vsub.f32 %v1034, %v448
        %v1052 = vmul.f32 %v1036, %v1036
        %v1053 = vmul.f32 %v1037, %v1037
        %v1054 = vmul.f32 %v1038, %v1038
        %v1055 = vmul.f32 %v1039, %v1039
        %v1056 = vmul.f32 %v1040, %v1040
        %v1057 = vmul.f32 %v1041, %v1041
        %v1058 = vmul.f32 %v1042, %v1042
        %v1059 = vmul.f32 %v1043, %v1043
        %v1060 = vmul.f32 %v1044, %v1044
        %v1061 = vmul.f32 %v1045, %v1045
        %v1062 = vmul.f32 %v1046, %v1046
        %v1063 = vmul.f32 %v1047, %v1047
        %v1064 = vmul.f32 %v1048, %v1048
        %v1065 = vmul.f32 %v1049, %v1049
        %v1066 = vmul.f32 %v1050, %v1050
        %v1067 = vmul.f32 %v1051, %v1051
        %v1068 = vadd.f32 %v956, %v1052
        %v1069 = vadd.f32 %v957, %v1053
        %v1070 = vadd.f32 %v958, %v1054
        %v1071 = vadd.f32 %v959, %v1055
        %v1072 = vadd.f32 %v960, %v1056
        %v1073 = vadd.f32 %v961, %v1057
        %v1074 = vadd.f32 %v962, %v1058
        %v1075 = vadd.f32 %v963, %v1059
        %v1076 = vadd.f32 %v964, %v1060
        %v1077 = vadd.f32 %v965, %v1061
        %v1078 = vadd.f32 %v966, %v1062
        %v1079 = vadd.f32 %v967, %v1063
        %v1080 = vadd.f32 %v968, %v1064
        %v1081 = vadd.f32 %v969, %v1065
        %v1082 = vadd.f32 %v970, %v1066
        %v1083 = vadd.f32 %v971, %v1067
        %v1084 = vmin.f32 %v1068, %v1072
        %v1085 = vmin.f32 %v1069, %v1073
        %v1086 = vmin.f32 %v1070, %v1074
        %v1087 = vmin.f32 %v1071, %v1075
        %v1088 = vmin.f32 %v1084, %v1076
        %v1089 = vmin.f32 %v1085, %v1077
        %v1090 = vmin.f32 %v1086, %v1078
        %v1091 = vmin.f32 %v1087, %v1079
        %v1092 = vmin.f32 %v1088, %v1080
        %v1093 = vmin.f32 %v1089, %v1081
        %v1094 = vmin.f32 %v1090, %v1082
        %v1095 = vmin.f32 %v1091, %v1083
        %v1096 = vmin.f32 %v1092, %v1093
        %v1097 = vmin.f32 %v1094, %v1095
        %v1098 = vmin.f32 %v1096, %v1097
        %v1099 = vrot.slane %v1098, 4
        %v1100 = vmin.f32 %v1098, %v1099
        %v1101 = vrot.slane %v1100, 2
        %v1102 = vmin.f32 %v1100, %v1101
        %v1103 = vrot.slane %v1102, 1
        %v1104 = vmin.f32 %v1102, %v1103
        %vm1105 = vcmp.eq.f32.partialorder %v1068, %v1104
        %vm1106 = vcmp.eq.f32.partialorder %v1069, %v1104
        %vm1107 = vcmp.eq.f32.partialorder %v1070, %v1104
        %vm1108 = vcmp.eq.f32.partialorder %v1071, %v1104
        %vm1109 = vcmp.eq.f32.partialorder %v1072, %v1104
        %vm1110 = vcmp.eq.f32.partialorder %v1073, %v1104
        %vm1111 = vcmp.eq.f32.partialorder %v1074, %v1104
        %vm1112 = vcmp.eq.f32.partialorder %v1075, %v1104
        %vm1113 = vcmp.eq.f32.partialorder %v1076, %v1104
        %vm1114 = vcmp.eq.f32.partialorder %v1077, %v1104
        %vm1115 = vcmp.eq.f32.partialorder %v1078, %v1104
        %vm1116 = vcmp.eq.f32.partialorder %v1079, %v1104
        %vm1117 = vcmp.eq.f32.partialorder %v1080, %v1104
        %vm1118 = vcmp.eq.f32.partialorder %v1081, %v1104
        %vm1119 = vcmp.eq.f32.partialorder %v1082, %v1104
        %vm1120 = vcmp.eq.f32.partialorder %v1083, %v1104
        %v1121 = vsel %vm1105, 3e+37, %v1068
        %v1122 = vsel %vm1106, 3e+37, %v1069
        %v1123 = vsel %vm1107, 3e+37, %v1070
        %v1124 = vsel %vm1108, 3e+37, %v1071
        %v1125 = vsel %vm1109, 3e+37, %v1072
        %v1126 = vsel %vm1110, 3e+37, %v1073
        %v1127 = vsel %vm1111, 3e+37, %v1074
        %v1128 = vsel %vm1112, 3e+37, %v1075
        %v1129 = vsel %vm1113, 3e+37, %v1076
        %v1130 = vsel %vm1114, 3e+37, %v1077
        %v1131 = vsel %vm1115, 3e+37, %v1078
        %v1132 = vsel %vm1116, 3e+37, %v1079
        %v1133 = vsel %vm1117, 3e+37, %v1080
        %v1134 = vsel %vm1118, 3e+37, %v1081
        %v1135 = vsel %vm1119, 3e+37, %v1082
        %v1136 = vsel %vm1120, 3e+37, %v1083
        %v1137 = vmin.f32 %v1121, %v1125
        %v1138 = vmin.f32 %v1122, %v1126
        %v1139 = vmin.f32 %v1123, %v1127
        %v1140 = vmin.f32 %v1124, %v1128
        %v1141 = vmin.f32 %v1137, %v1129
        %v1142 = vmin.f32 %v1138, %v1130
        %v1143 = vmin.f32 %v1139, %v1131
        %v1144 = vmin.f32 %v1140, %v1132
        %v1145 = vmin.f32 %v1141, %v1133
        %v1146 = vmin.f32 %v1142, %v1134
        %v1147 = vmin.f32 %v1143, %v1135
        %v1148 = vmin.f32 %v1144, %v1136
        %v1149 = vmin.f32 %v1145, %v1146
        %v1150 = vmin.f32 %v1147, %v1148
        %v1151 = vmin.f32 %v1149, %v1150
        %v1152 = vrot.slane %v1151, 4
        %v1153 = vmin.f32 %v1151, %v1152
        %v1154 = vrot.slane %v1153, 2
        %v1155 = vmin.f32 %v1153, %v1154
        %v1156 = vrot.slane %v1155, 1
        %v1157 = vmin.f32 %v1155, %v1156
        %vm1158 = vcmp.eq.f32.partialorder %v1121, %v1157
        %vm1159 = vcmp.eq.f32.partialorder %v1122, %v1157
        %vm1160 = vcmp.eq.f32.partialorder %v1123, %v1157
        %vm1161 = vcmp.eq.f32.partialorder %v1124, %v1157
        %vm1162 = vcmp.eq.f32.partialorder %v1125, %v1157
        %vm1163 = vcmp.eq.f32.partialorder %v1126, %v1157
        %vm1164 = vcmp.eq.f32.partialorder %v1127, %v1157
        %vm1165 = vcmp.eq.f32.partialorder %v1128, %v1157
        %vm1166 = vcmp.eq.f32.partialorder %v1129, %v1157
        %vm1167 = vcmp.eq.f32.partialorder %v1130, %v1157
        %vm1168 = vcmp.eq.f32.partialorder %v1131, %v1157
        %vm1169 = vcmp.eq.f32.partialorder %v1132, %v1157
        %vm1170 = vcmp.eq.f32.partialorder %v1133, %v1157
        %vm1171 = vcmp.eq.f32.partialorder %v1134, %v1157
        %vm1172 = vcmp.eq.f32.partialorder %v1135, %v1157
        %vm1173 = vcmp.eq.f32.partialorder %v1136, %v1157
        %v1174 = vsel %vm1158, 3e+37, %v1121
        %v1175 = vsel %vm1159, 3e+37, %v1122
        %v1176 = vsel %vm1160, 3e+37, %v1123
        %v1177 = vsel %vm1161, 3e+37, %v1124
        %v1178 = vsel %vm1162, 3e+37, %v1125
        %v1179 = vsel %vm1163, 3e+37, %v1126
        %v1180 = vsel %vm1164, 3e+37, %v1127
        %v1181 = vsel %vm1165, 3e+37, %v1128
        %v1182 = vsel %vm1166, 3e+37, %v1129
        %v1183 = vsel %vm1167, 3e+37, %v1130
        %v1184 = vsel %vm1168, 3e+37, %v1131
        %v1185 = vsel %vm1169, 3e+37, %v1132
        %v1186 = vsel %vm1170, 3e+37, %v1133
        %v1187 = vsel %vm1171, 3e+37, %v1134
        %v1188 = vsel %vm1172, 3e+37, %v1135
        %v1189 = vsel %vm1173, 3e+37, %v1136
        %v1190 = vmin.f32 %v1174, %v1178
        %v1191 = vmin.f32 %v1175, %v1179
        %v1192 = vmin.f32 %v1176, %v1180
        %v1193 = vmin.f32 %v1177, %v1181
        %v1194 = vmin.f32 %v1190, %v1182
        %v1195 = vmin.f32 %v1191, %v1183
        %v1196 = vmin.f32 %v1192, %v1184
        %v1197 = vmin.f32 %v1193, %v1185
        %v1198 = vmin.f32 %v1194, %v1186
        %v1199 = vmin.f32 %v1195, %v1187
        %v1200 = vmin.f32 %v1196, %v1188
        %v1201 = vmin.f32 %v1197, %v1189
        %v1202 = vmin.f32 %v1198, %v1199
        %v1203 = vmin.f32 %v1200, %v1201
        %v1204 = vmin.f32 %v1202, %v1203
        %v1205 = vrot.slane %v1204, 4
        %v1206 = vmin.f32 %v1204, %v1205
        %v1207 = vrot.slane %v1206, 2
        %v1208 = vmin.f32 %v1206, %v1207
        %v1209 = vrot.slane %v1208, 1
        %v1210 = vmin.f32 %v1208, %v1209
        %vm1211 = vcmp.eq.f32.partialorder %v1174, %v1210
        %vm1212 = vcmp.eq.f32.partialorder %v1175, %v1210
        %vm1213 = vcmp.eq.f32.partialorder %v1176, %v1210
        %vm1214 = vcmp.eq.f32.partialorder %v1177, %v1210
        %vm1215 = vcmp.eq.f32.partialorder %v1178, %v1210
        %vm1216 = vcmp.eq.f32.partialorder %v1179, %v1210
        %vm1217 = vcmp.eq.f32.partialorder %v1180, %v1210
        %vm1218 = vcmp.eq.f32.partialorder %v1181, %v1210
        %vm1219 = vcmp.eq.f32.partialorder %v1182, %v1210
        %vm1220 = vcmp.eq.f32.partialorder %v1183, %v1210
        %vm1221 = vcmp.eq.f32.partialorder %v1184, %v1210
        %vm1222 = vcmp.eq.f32.partialorder %v1185, %v1210
        %vm1223 = vcmp.eq.f32.partialorder %v1186, %v1210
        %vm1224 = vcmp.eq.f32.partialorder %v1187, %v1210
        %vm1225 = vcmp.eq.f32.partialorder %v1188, %v1210
        %vm1226 = vcmp.eq.f32.partialorder %v1189, %v1210
        %v1227 = vsel %vm1211, 3e+37, %v1174
        %v1228 = vsel %vm1212, 3e+37, %v1175
        %v1229 = vsel %vm1213, 3e+37, %v1176
        %v1230 = vsel %vm1214, 3e+37, %v1177
        %v1231 = vsel %vm1215, 3e+37, %v1178
        %v1232 = vsel %vm1216, 3e+37, %v1179
        %v1233 = vsel %vm1217, 3e+37, %v1180
        %v1234 = vsel %vm1218, 3e+37, %v1181
        %v1235 = vsel %vm1219, 3e+37, %v1182
        %v1236 = vsel %vm1220, 3e+37, %v1183
        %v1237 = vsel %vm1221, 3e+37, %v1184
        %v1238 = vsel %vm1222, 3e+37, %v1185
        %v1239 = vsel %vm1223, 3e+37, %v1186
        %v1240 = vsel %vm1224, 3e+37, %v1187
        %v1241 = vsel %vm1225, 3e+37, %v1188
        %v1242 = vsel %vm1226, 3e+37, %v1189
        %v1243 = vmin.f32 %v1227, %v1231
        %v1244 = vmin.f32 %v1228, %v1232
        %v1245 = vmin.f32 %v1229, %v1233
        %v1246 = vmin.f32 %v1230, %v1234
        %v1247 = vmin.f32 %v1243, %v1235
        %v1248 = vmin.f32 %v1244, %v1236
        %v1249 = vmin.f32 %v1245, %v1237
        %v1250 = vmin.f32 %v1246, %v1238
        %v1251 = vmin.f32 %v1247, %v1239
        %v1252 = vmin.f32 %v1248, %v1240
        %v1253 = vmin.f32 %v1249, %v1241
        %v1254 = vmin.f32 %v1250, %v1242
        %v1255 = vmin.f32 %v1251, %v1252
        %v1256 = vmin.f32 %v1253, %v1254
        %v1257 = vmin.f32 %v1255, %v1256
        %v1258 = vrot.slane %v1257, 4
        %v1259 = vmin.f32 %v1257, %v1258
        %v1260 = vrot.slane %v1259, 2
        %v1261 = vmin.f32 %v1259, %v1260
        %v1262 = vrot.slane %v1261, 1
        %v1263 = vmin.f32 %v1261, %v1262
        %v1264 = vmin.f32 %v568, %v1104
        %v1265 = vmax.f32 %v568, %v1104
        %v1266 = vmin.f32 %v621, %v1265
        %v1267 = vmax.f32 %v621, %v1265
        %v1268 = vmin.f32 %v674, %v1267
        %v1269 = vmax.f32 %v674, %v1267
        %v1270 = vmin.f32 %v727, %v1269
        %v1271 = vmin.f32 %v1266, %v1157
        %v1272 = vmax.f32 %v1266, %v1157
        %v1273 = vmin.f32 %v1268, %v1272
        %v1274 = vmax.f32 %v1268, %v1272
        %v1275 = vmin.f32 %v1270, %v1274
        %v1276 = vmin.f32 %v1273, %v1210
        %v1277 = vmax.f32 %v1273, %v1210
        %v1278 = vmin.f32 %v1275, %v1277
        %v1279 = vmin.f32 %v1278, %v1263
        %1280 = vst [vmem:[%s134] sm:$0x1] %v1264
        %1281 = vst [vmem:[%s134 + $0x1] sm:$0x1] %v1271
        %1282 = vst [vmem:[%s134 + $0x2] sm:$0x1] %v1276
        %1283 = vst [vmem:[%s134 + $0x3] sm:$0x1] %v1279
        %s1284 = sand.u32 %s71, 1
        %s1285 = scalar_lea.sflag [#allocation3], %s1284
        %s1286 = sand.u32 %s71, 1
        %s1287 = smul.addr %s1286, 4
        %s1288 = scalar_lea.vmem [#allocation2], %s1287
        // Predicated region
        $region29: #{tpu_custom_call.1} parent=27 // pred_check
          %p1289 = pneg %p81
        $region30: #{tpu_custom_call.1} parent=27 // pred_check_branch
          %1291 = sbr.rel (%p1289) target = $region32
        $region31: #{tpu_custom_call.1} parent=27 // pred_region
          %1293 = vsyncadd %s1285, 0
          %s1294 = smul.addr %s16, 4
          %s1295 = scalar_lea.hbm %s2, %s1294
          %s1297 = sshll.u32 %s1288, 4
          %s1298 = int_to_ptr.vmem [resolvable:$true] %s1297
          %s1299 = sshll.u32 %s1295, 4
          %s1300 = int_to_ptr.hbm [resolvable:$true] %s1299
          %1302 = dma.vmem_to_hbm [thread:$0]  %s1298, 64, %s1300, %s1285
        $region32: #{tpu_custom_call.1} parent=27 // pred_fallthru
          _
      $region28: #{tpu_custom_call.1} parent=5 // pred_fallthru
        _
      %p1303 = scmp.le.s32.totalorder 2, %s11
      // Predicated region
      $region33: #{tpu_custom_call.1} parent=5 // pred_check
        %p1304 = pneg %p1303
      $region34: #{tpu_custom_call.1} parent=5 // pred_check_branch
        %1306 = sbr.rel (%p1304) target = $region36
      $region35: #{tpu_custom_call.1} parent=5 // pred_region
        %s1307 = ssub.s32 %s11, 2
        // Predicated region
        $region37: #{tpu_custom_call.1} parent=35 // pred_check
          %p1308 = pneg %p87
        $region38: #{tpu_custom_call.1} parent=35 // pred_check_branch
          %1310 = sbr.rel (%p1308) target = $region40
        $region39: #{tpu_custom_call.1} parent=35 // pred_region
          %s1311 = sand.u32 %s72, 1
          %s1312 = scalar_lea.sflag [#allocation3], %s1311
          %s1313 = sand.u32 %s72, 1
          %s1314 = smul.addr %s1313, 4
          %s1315 = scalar_lea.vmem [#allocation2], %s1314
          %1317 = dma.done %s1312, 64
        $region40: #{tpu_custom_call.1} parent=35 // pred_fallthru
          _
      $region36: #{tpu_custom_call.1} parent=5 // pred_fallthru
        _
    $region6: #{tpu_custom_call.1} parent=1 // loop_footer
      %s15 = sadd.s32 1, %s11
    $region7: #{tpu_custom_call.1} parent=1 // loop_footer_branch
      %10 = sbr.rel target = $region3
    $region8: #{tpu_custom_call.1} parent=1 // loop_exit
      _
    %1318 = vsyncpa [#allocation3], 1
    %s1319 = scalar_lea.sflag [#allocation3], 1
    %1320 = vsyncpa %s1319, 1

</llo_original>
